<compile_context>
chip_gen: v7x
topology: tpu7x:2x2x1
jax: 0.10.0
libtpu: 0.0.40
codegen_flags: <defaults>
</compile_context>

<pallas_src>
import functools

import jax
import jax.numpy as jnp
from jax.experimental import pallas as pl
from jax.experimental.pallas import tpu as pltpu

_LANE = 128


# ----------------------------- activations ---------------------------------
def _apply_activation_t(y, act):
    """In-kernel activations on (features, batch)-transposed tiles."""
    if act is None or act == "linear":
        return y
    if act == "relu":
        return jnp.maximum(y, 0.0)
    if act == "sigmoid":
        return jax.nn.sigmoid(y)
    if act == "softplus":
        return jax.nn.softplus(y)
    if act == "tanh":
        return jnp.tanh(y)
    if act == "leakyrelu":
        return jnp.where(y >= 0.0, y, 0.2 * y)  # nn.LeakyReLU(0.2)
    if act == "elu":
        return jnp.where(y >= 0.0, y, jnp.exp(y) - 1.0)  # nn.ELU(alpha=1.0)
    if act == "softmax":
        # nn.Softmax(dim=1): the feature axis is axis 0 in the transposed
        # layout.  Exact division (not approx reciprocal) for 1e-5 parity.
        m = jnp.max(y, axis=0, keepdims=True)
        e = jnp.exp(y - m)
        return e / jnp.sum(e, axis=0, keepdims=True)
    raise ValueError(f"Unexpected activation: {act}")


def _ref_activation(y, act):
    """Plain-JAX reference activations on (batch, features) arrays."""
    if act is None or act == "linear":
        return y
    if act == "relu":
        return jnp.maximum(y, 0.0)
    if act == "sigmoid":
        return jax.nn.sigmoid(y)
    if act == "softplus":
        return jax.nn.softplus(y)
    if act == "tanh":
        return jnp.tanh(y)
    if act == "leakyrelu":
        return jnp.where(y >= 0.0, y, 0.2 * y)
    if act == "elu":
        return jnp.where(y >= 0.0, y, jnp.exp(y) - 1.0)
    if act == "softmax":
        return jax.nn.softmax(y, axis=1)
    raise ValueError(f"Unexpected activation: {act}")


# ------------------------------- fused kernel ------------------------------
def _fc_vec_fused_kernel(*refs, acts, matmul_dtype):
    """refs = (x_ref, w1_ref, b1_ref, w2_ref, b2_ref, ..., o_ref).

    Transposed (lane-dense) layout: x_ref is (Din, tile_b), weights are in
    PyTorch layout (d_out, d_in), biases are (d_out, 1), output is
    (Dout, tile_b).  Each layer is y <- act(W @ y + b); all intermediates
    live in vregs/VMEM with the batch on the 128-wide lane axis.
    """
    x_ref = refs[0]
    o_ref = refs[-1]
    layer_refs = refs[1:-1]

    y = x_ref[...].astype(jnp.float32)
    for i, act in enumerate(acts):
        w = layer_refs[2 * i][...]                 # (d_out, d_in)
        b = layer_refs[2 * i + 1][...]             # (d_out, 1)
        # MXU is otherwise idle in this kernel -> jnp.dot even for tiny K.
        z = jnp.dot(w.astype(matmul_dtype), y.astype(matmul_dtype),
                    preferred_element_type=jnp.float32)  # (d_out, tile_b)
        # Bias add + activation in f32 (v5e has no bf16 VPU/EUP).
        y = _apply_activation_t(z + b.astype(jnp.float32), act)

    o_ref[...] = y.astype(o_ref.dtype)


# ------------------------------- tiling helpers -----------------------------
def _round_up(a, m):
    return (a + m - 1) // m * m


def _choose_batch_tiling(batch, max_batch_tile):
    """Pick (tile_b, padded_b) for the lane (batch) axis.

    Small batches: a single whole-array block (block extent == array extent,
    so no (8,128) alignment constraint and no padding).  Larger batches use
    lane-aligned tiles chosen to (a) amortize the ~0.35us/step overhead,
    (b) bound padding waste, and (c) give >=2 grid steps so the "parallel"
    batch axis shards across both TensorCores on v7x.
    """
    if batch <= _LANE:
        return batch, batch
    padded_full = _round_up(batch, _LANE)
    for t in (8192, 4096, 2048, 1024, 512, 256, 128):
        if t > max_batch_tile:
            continue
        p = _round_up(batch, t)
        if (p - batch) > max(0.25 * batch, _LANE):      # bound wasted work
            continue
        if p // t < 2 and padded_full >= 2 * _LANE:     # keep both v7x TCs busy
            continue
        return t, p
    return _LANE, padded_full


# ------------------------------- wrapper ------------------------------------
def fc_vec_forward(params, activations, x, *, max_batch_tile=4096,
                   matmul_dtype=jnp.float32):
    """Fused FC_vec forward: one pallas_call for the whole MLP.

    params: list of (w, b), w in PyTorch layout (d_out, d_in), b: (d_out,).
    activations: list of activation names, one per layer.
    x: (B, in_chan) array.  Returns (B, out_chan).

    For very large batches on v6e/v7x, pass matmul_dtype=jnp.bfloat16 to run
    the MXU at full bf16 rate (accumulation stays f32); default f32 keeps
    exact PyTorch parity.
    """
    assert len(params) == len(activations)
    B, Din = x.shape
    Dout = params[-1][0].shape[0]

    tile_b, padded_b = _choose_batch_tiling(B, max_batch_tile)

    # Lane-dense layout: transpose once wrapper-side so batch is on lanes.
    x_t = x.T                                    # (Din, B)
    if padded_b != B:
        x_t = jnp.pad(x_t, ((0, 0), (0, padded_b - B)))
    grid = (padded_b // tile_b,)

    flat_inputs = [x_t]
    in_specs = [pl.BlockSpec((Din, tile_b), lambda i: (0, i))]
    weight_bytes = 0
    for (w, b) in params:
        d_out, d_in = w.shape
        flat_inputs.append(w)
        # index_map (0, 0): weights/biases stay VMEM-resident across steps.
        in_specs.append(pl.BlockSpec((d_out, d_in), lambda i: (0, 0)))
        flat_inputs.append(b.reshape(d_out, 1))
        in_specs.append(pl.BlockSpec((d_out, 1), lambda i: (0, 0)))
        weight_bytes += (d_out * d_in + d_out) * w.dtype.itemsize

    # Advisory cost estimate so XLA schedules sensibly around this tiny call.
    flops = 2 * padded_b * sum(w.shape[0] * w.shape[1] for w, _ in params)
    transcendental_acts = {"sigmoid", "softplus", "tanh", "elu", "softmax"}
    transcendentals = padded_b * sum(
        w.shape[0] for (w, _), a in zip(params, activations)
        if a in transcendental_acts)
    bytes_accessed = (x.size + padded_b * Dout) * x.dtype.itemsize + weight_bytes

    # Scoped VMEM with headroom: double-buffered x/out tiles + resident
    # weights + intermediate working set.  Capped under v7x's 64 MiB physical.
    max_width = max([Din, Dout] + [w.shape[0] for w, _ in params])
    vmem_need = (2 * tile_b * (Din + Dout) * 4 + weight_bytes
                 + 4 * tile_b * max_width * 4)
    vmem_limit = int(min(max(vmem_need, 16 * 2 ** 20), 48 * 2 ** 20))

    kernel = functools.partial(_fc_vec_fused_kernel, acts=tuple(activations),
                               matmul_dtype=matmul_dtype)
    out_t = pl.pallas_call(
        kernel,
        out_shape=jax.ShapeDtypeStruct((Dout, padded_b), x.dtype),
        grid=grid,
        in_specs=in_specs,
        # Lane-dense output slab: full 128-lane stores even though Dout == 1.
        out_specs=pl.BlockSpec((Dout, tile_b), lambda i: (0, i)),
        compiler_params=pltpu.CompilerParams(
            dimension_semantics=("parallel",),
            vmem_limit_bytes=vmem_limit),
        cost_estimate=pl.CostEstimate(
            flops=flops, transcendentals=transcendentals,
            bytes_accessed=bytes_accessed),
    )(*flat_inputs)

    return out_t[:, :B].T                        # back to (B, Dout)


# ------------------------------ FC_vec params --------------------------------
def init_fc_vec_params(key, in_chan, out_chan, l_hidden):
    """Deterministic init mirroring nn.Linear default (uniform +-1/sqrt(fan_in)).

    Weights are stored in PyTorch layout (out_features, in_features).
    """
    dims = [in_chan] + list(l_hidden) + [out_chan]
    params = []
    for d_in, d_out in zip(dims[:-1], dims[1:]):
        key, kw, kb = jax.random.split(key, 3)
        bound = 1.0 / jnp.sqrt(jnp.float32(d_in))
        w = jax.random.uniform(kw, (d_out, d_in), jnp.float32, -bound, bound)
        b = jax.random.uniform(kb, (d_out,), jnp.float32, -bound, bound)
        params.append((w, b))
    return params


# --------------------------------- main --------------------------------------
if __name__ == "__main__":
    # Matches FC_vec(in_chan=2, out_chan=1, l_hidden=[32, 32],
    #                activation=['relu', 'relu'], out_activation='linear')
    in_chan = 2
    out_chan = 1
    l_hidden = [32, 32]
    activation = ["relu", "relu"]
    out_activation = "linear"
    acts = activation + [out_activation]

    key = jax.random.PRNGKey(0)
    key_p, key_x, key_x2 = jax.random.split(key, 3)
    params = init_fc_vec_params(key_p, in_chan, out_chan, l_hidden)

    def ref_forward(x):
        # Plain-JAX reference (PyTorch semantics: y = x @ W.T + b).
        y = x
        for (w, b), act in zip(params, acts):
            y = _ref_activation(y @ w.T + b.reshape(1, -1), act)
        return y

    fwd = jax.jit(functools.partial(fc_vec_forward, params, acts))

    # Small-batch path: single whole-array block.
    batch = 8
    x = jax.random.normal(key_x, (batch, in_chan), jnp.float32)
    out = fwd(x)
    jax.block_until_ready(out)
    assert out.shape == (batch, out_chan)
    assert jnp.allclose(out, ref_forward(x), atol=1e-5, rtol=1e-5)

    # Larger-batch path: lane-tiled grid with batch padding.
    batch2 = 300
    x2 = jax.random.normal(key_x2, (batch2, in_chan), jnp.float32)
    out2 = fwd(x2)
    jax.block_until_ready(out2)
    assert out2.shape == (batch2, out_chan)
    assert jnp.allclose(out2, ref_forward(x2), atol=1e-5, rtol=1e-5)

    print("KERNEL_OK")
</pallas_src>

<mosaic_0001>
module attributes {stable_mosaic.version = 11 : i64} {
  func.func @_fc_vec_fused_kernel(%arg0: i32, %arg1: memref<2x8xf32, #tpu.memory_space<vmem>>, %arg2: memref<32x2xf32, #tpu.memory_space<vmem>>, %arg3: memref<32x1xf32, #tpu.memory_space<vmem>>, %arg4: memref<32x32xf32, #tpu.memory_space<vmem>>, %arg5: memref<32x1xf32, #tpu.memory_space<vmem>>, %arg6: memref<1x32xf32, #tpu.memory_space<vmem>>, %arg7: memref<1x1xf32, #tpu.memory_space<vmem>>, %arg8: memref<1x8xf32, #tpu.memory_space<vmem>>) attributes {dimension_semantics = [#tpu.dimension_semantics<parallel>], iteration_bounds = array<i64: 1>, scalar_prefetch = 0 : i64, scratch_operands = 0 : i64, tpu.core_type = #tpu.core_type<tc>, window_params = [{transform_indices = @transform_0, window_bounds = array<i64: 2, 8>}, {pipeline_mode = #tpu.pipeline_mode<synchronous>, transform_indices = @transform_1, window_bounds = array<i64: 32, 2>}, {pipeline_mode = #tpu.pipeline_mode<synchronous>, transform_indices = @transform_2, window_bounds = array<i64: 32, 1>}, {pipeline_mode = #tpu.pipeline_mode<synchronous>, transform_indices = @transform_3, window_bounds = array<i64: 32, 32>}, {pipeline_mode = #tpu.pipeline_mode<synchronous>, transform_indices = @transform_4, window_bounds = array<i64: 32, 1>}, {pipeline_mode = #tpu.pipeline_mode<synchronous>, transform_indices = @transform_5, window_bounds = array<i64: 1, 32>}, {pipeline_mode = #tpu.pipeline_mode<synchronous>, transform_indices = @transform_6, window_bounds = array<i64: 1, 1>}, {transform_indices = @transform_7, window_bounds = array<i64: 1, 8>}]} {
    %c0 = arith.constant 0 : index
    %c0_0 = arith.constant 0 : index
    %0 = vector.load %arg1[%c0, %c0_0] : memref<2x8xf32, #tpu.memory_space<vmem>>, vector<2x8xf32>
    %c0_1 = arith.constant 0 : index
    %c0_2 = arith.constant 0 : index
    %1 = vector.load %arg2[%c0_1, %c0_2] : memref<32x2xf32, #tpu.memory_space<vmem>>, vector<32x2xf32>
    %c0_3 = arith.constant 0 : index
    %c0_4 = arith.constant 0 : index
    %2 = vector.load %arg3[%c0_3, %c0_4] : memref<32x1xf32, #tpu.memory_space<vmem>>, vector<32x1xf32>
    %cst = arith.constant dense<0.000000e+00> : vector<32x8xf32>
    %3 = tpu.matmul %1, %0, %cst {dimension_numbers = #tpu.dot_dimension_numbers<[1], [0], [0], [1], [0, 0, 1, 1], [], []>} : vector<32x2xf32>, vector<2x8xf32>, vector<32x8xf32> -> vector<32x8xf32>
    %4 = vector.broadcast %2 : vector<32x1xf32> to vector<32x8xf32>
    %5 = arith.addf %3, %4 : vector<32x8xf32>
    %cst_5 = arith.constant 0.000000e+00 : f32
    %6 = vector.broadcast %cst_5 : f32 to vector<32x8xf32>
    %7 = arith.maximumf %5, %6 : vector<32x8xf32>
    %c0_6 = arith.constant 0 : index
    %c0_7 = arith.constant 0 : index
    %8 = vector.load %arg4[%c0_6, %c0_7] : memref<32x32xf32, #tpu.memory_space<vmem>>, vector<32x32xf32>
    %c0_8 = arith.constant 0 : index
    %c0_9 = arith.constant 0 : index
    %9 = vector.load %arg5[%c0_8, %c0_9] : memref<32x1xf32, #tpu.memory_space<vmem>>, vector<32x1xf32>
    %cst_10 = arith.constant dense<0.000000e+00> : vector<32x8xf32>
    %10 = tpu.matmul %8, %7, %cst_10 {dimension_numbers = #tpu.dot_dimension_numbers<[1], [0], [0], [1], [0, 0, 1, 1], [], []>} : vector<32x32xf32>, vector<32x8xf32>, vector<32x8xf32> -> vector<32x8xf32>
    %11 = vector.broadcast %9 : vector<32x1xf32> to vector<32x8xf32>
    %12 = arith.addf %10, %11 : vector<32x8xf32>
    %cst_11 = arith.constant 0.000000e+00 : f32
    %13 = vector.broadcast %cst_11 : f32 to vector<32x8xf32>
    %14 = arith.maximumf %12, %13 : vector<32x8xf32>
    %c0_12 = arith.constant 0 : index
    %c0_13 = arith.constant 0 : index
    %15 = vector.load %arg6[%c0_12, %c0_13] : memref<1x32xf32, #tpu.memory_space<vmem>>, vector<1x32xf32>
    %c0_14 = arith.constant 0 : index
    %c0_15 = arith.constant 0 : index
    %16 = vector.load %arg7[%c0_14, %c0_15] : memref<1x1xf32, #tpu.memory_space<vmem>>, vector<1x1xf32>
    %cst_16 = arith.constant dense<0.000000e+00> : vector<1x8xf32>
    %17 = tpu.matmul %15, %14, %cst_16 {dimension_numbers = #tpu.dot_dimension_numbers<[1], [0], [0], [1], [0, 0, 1, 1], [], []>} : vector<1x32xf32>, vector<32x8xf32>, vector<1x8xf32> -> vector<1x8xf32>
    %18 = vector.broadcast %16 : vector<1x1xf32> to vector<1x8xf32>
    %19 = arith.addf %17, %18 : vector<1x8xf32>
    %c0_17 = arith.constant 0 : index
    %c0_18 = arith.constant 0 : index
    %20 = vector.load %arg8[%c0_17, %c0_18] : memref<1x8xf32, #tpu.memory_space<vmem>>, vector<1x8xf32>
    tpu.vector_store %arg8[%c0_17, %c0_18], %19 {strides = array<i32>} : memref<1x8xf32, #tpu.memory_space<vmem>>, vector<1x8xf32>,
    return
  }
  func.func @transform_0(%arg0: i32) -> (i32, i32) {
    %c0_i32 = arith.constant 0 : i32
    %c0_i32_0 = arith.constant 0 : i32
    return %c0_i32, %arg0 : i32, i32
  }
  func.func @transform_1(%arg0: i32) -> (i32, i32) {
    %c0_i32 = arith.constant 0 : i32
    %c0_i32_0 = arith.constant 0 : i32
    %c0_i32_1 = arith.constant 0 : i32
    return %c0_i32, %c0_i32_0 : i32, i32
  }
  func.func @transform_2(%arg0: i32) -> (i32, i32) {
    %c0_i32 = arith.constant 0 : i32
    %c0_i32_0 = arith.constant 0 : i32
    %c0_i32_1 = arith.constant 0 : i32
    return %c0_i32, %c0_i32_0 : i32, i32
  }
  func.func @transform_3(%arg0: i32) -> (i32, i32) {
    %c0_i32 = arith.constant 0 : i32
    %c0_i32_0 = arith.constant 0 : i32
    %c0_i32_1 = arith.constant 0 : i32
    return %c0_i32, %c0_i32_0 : i32, i32
  }
  func.func @transform_4(%arg0: i32) -> (i32, i32) {
    %c0_i32 = arith.constant 0 : i32
    %c0_i32_0 = arith.constant 0 : i32
    %c0_i32_1 = arith.constant 0 : i32
    return %c0_i32, %c0_i32_0 : i32, i32
  }
  func.func @transform_5(%arg0: i32) -> (i32, i32) {
    %c0_i32 = arith.constant 0 : i32
    %c0_i32_0 = arith.constant 0 : i32
    %c0_i32_1 = arith.constant 0 : i32
    return %c0_i32, %c0_i32_0 : i32, i32
  }
  func.func @transform_6(%arg0: i32) -> (i32, i32) {
    %c0_i32 = arith.constant 0 : i32
    %c0_i32_0 = arith.constant 0 : i32
    %c0_i32_1 = arith.constant 0 : i32
    return %c0_i32, %c0_i32_0 : i32, i32
  }
  func.func @transform_7(%arg0: i32) -> (i32, i32) {
    %c0_i32 = arith.constant 0 : i32
    %c0_i32_0 = arith.constant 0 : i32
    return %c0_i32, %arg0 : i32, i32
  }
}

</mosaic_0001>

<llo_original>
// kernel: fc_vec_forward.1
$region0: #{fc_vec_forward.1}
  #allocation0 [shape = 'u32[]', space=smem, size = 0x4, offset = 0x4, fixed_abs, tag = 'smem constant byte address 0x4 - core index']
  #allocation1 [shape = 'u32[144,128]{1,0:T(1,128)}', space=vmem, size = 0x12000, scoped, tag = 'internal scratch']
  #allocation2 [shape = 'f32[1,1]{1,0:T(1,128)S(1)}', space=vmem, size = 0x200, scoped, tag = 'scoped memory for fc_vec_forward.1']
  %s0 = inlined_call_operand.vmem [shape: f32[2,8], index: 0, kind: input, shape index: {}]
  %s1 = inlined_call_operand.hbm [shape: f32[32,2], index: 1, kind: input, shape index: {}]
  %s2 = inlined_call_operand.hbm [shape: f32[32,1], index: 2, kind: input, shape index: {}]
  %s3 = inlined_call_operand.hbm [shape: f32[32,32], index: 3, kind: input, shape index: {}]
  %s4 = inlined_call_operand.hbm [shape: f32[32,1], index: 4, kind: input, shape index: {}]
  %s5 = inlined_call_operand.vmem [shape: f32[1,32], index: 5, kind: input, shape index: {}]
  %s6 = inlined_call_operand.<no memory space> [shape: f32[1,1], index: 6, kind: input, shape index: {}]
  %s7 = inlined_call_operand.hbm [shape: f32[1,8], index: 7, kind: output, shape index: {}]
  %s8 = sld [smem:[#allocation0]]
  $region54: #{fc_vec_forward.1} parent=0
    _
  %s10 = ssub.s32 1, %s8
  %s11 = scalar_select 0, %s10, %s8
  %v12 = vstv %s6
  %13 = vst [vmem:[#allocation2] sm:$0x1] %v12
  $region1: #{fc_vec_forward.1} parent=0
    #allocation3 [shape = 'u8[16384]{0}', space=vmem, size = 0x4000, scoped, tag = 'input window, operand 1, single buffered']
    #allocation4 [shape = 's32[1]{0}', space=sflag, size = 0x4, scoped, tag = 'scoped memory for fc_vec_forward.1']
    #allocation5 [shape = 's32[1]{0}', space=sflag, size = 0x4, scoped, tag = 'scoped memory for fc_vec_forward.1']
    #allocation6 [shape = 'u8[16384]{0}', space=vmem, size = 0x4000, scoped, tag = 'input window, operand 2, single buffered']
    #allocation7 [shape = 's32[1]{0}', space=sflag, size = 0x4, scoped, tag = 'scoped memory for fc_vec_forward.1']
    #allocation8 [shape = 'u8[16384]{0}', space=vmem, size = 0x4000, scoped, tag = 'input window, operand 3, single buffered']
    #allocation9 [shape = 'u8[16384]{0}', space=vmem, size = 0x4000, scoped, tag = 'input window, operand 4, single buffered']
    #allocation10 [shape = 's32[1]{0}', space=sflag, size = 0x4, scoped, tag = 'scoped memory for fc_vec_forward.1']
    #allocation11 [shape = 'u8[512]{0}', space=vmem, size = 0x400, scoped, tag = 'output window, operand 0, single buffered']
    %14 = vsyncpa [#allocation4], 0
    %15 = vsyncpa [#allocation7], 0
    %16 = vsyncpa [#allocation10], 0
    %17 = vsyncpa [#allocation5], 0
    // Predicated region
    $region2: #{fc_vec_forward.1} parent=1 // pred_check
      _
    $region3: #{fc_vec_forward.1} parent=1 // pred_check_branch
      %19 = sbr.rel (0) target = $region5
    $region4: #{fc_vec_forward.1} parent=1 // pred_region
      _
    $region5: #{fc_vec_forward.1} parent=1 // pred_fallthru
      _
    // Predicated region
    $region6: #{fc_vec_forward.1} parent=1 // pred_check
      _
    $region7: #{fc_vec_forward.1} parent=1 // pred_check_branch
      %21 = sbr.rel (0) target = $region9
    $region8: #{fc_vec_forward.1} parent=1 // pred_region
      %s23 = ssub.s32 512, 512
      %24 = vsyncadd [#allocation4], %s23
      %s25 = sshll.u32 [#allocation3], 4
      %s26 = int_to_ptr.vmem [resolvable:$true] %s25
      %31 = dma.hbm_to_vmem [thread:$0]  %s1, 512, %s26, [#allocation4], 128, 128, 8
    $region9: #{fc_vec_forward.1} parent=1 // pred_fallthru
      _
    // Predicated region
    $region10: #{fc_vec_forward.1} parent=1 // pred_check
      _
    $region11: #{fc_vec_forward.1} parent=1 // pred_check_branch
      %33 = sbr.rel (0) target = $region13
    $region12: #{fc_vec_forward.1} parent=1 // pred_region
      %s35 = ssub.s32 512, 512
      %36 = vsyncadd [#allocation7], %s35
      %s37 = sshll.u32 [#allocation6], 4
      %s38 = int_to_ptr.vmem [resolvable:$true] %s37
      %43 = dma.hbm_to_vmem [thread:$0]  %s2, 512, %s38, [#allocation7], 128, 128, 8
    $region13: #{fc_vec_forward.1} parent=1 // pred_fallthru
      _
    // Predicated region
    $region14: #{fc_vec_forward.1} parent=1 // pred_check
      _
    $region15: #{fc_vec_forward.1} parent=1 // pred_check_branch
      %45 = sbr.rel (0) target = $region17
    $region16: #{fc_vec_forward.1} parent=1 // pred_region
      %s47 = ssub.s32 512, 512
      %48 = vsyncadd [#allocation7], %s47
      %s49 = sshll.u32 [#allocation8], 4
      %s50 = int_to_ptr.vmem [resolvable:$true] %s49
      %55 = dma.hbm_to_vmem [thread:$0]  %s3, 512, %s50, [#allocation7], 128, 128, 8
    $region17: #{fc_vec_forward.1} parent=1 // pred_fallthru
      _
    // Predicated region
    $region18: #{fc_vec_forward.1} parent=1 // pred_check
      _
    $region19: #{fc_vec_forward.1} parent=1 // pred_check_branch
      %57 = sbr.rel (0) target = $region21
    $region20: #{fc_vec_forward.1} parent=1 // pred_region
      %s59 = ssub.s32 512, 512
      %60 = vsyncadd [#allocation10], %s59
      %s61 = sshll.u32 [#allocation9], 4
      %s62 = int_to_ptr.vmem [resolvable:$true] %s61
      %67 = dma.hbm_to_vmem [thread:$0]  %s4, 512, %s62, [#allocation10], 128, 128, 8
    $region21: #{fc_vec_forward.1} parent=1 // pred_fallthru
      _
    // Predicated region
    $region22: #{fc_vec_forward.1} parent=1 // pred_check
      _
    $region23: #{fc_vec_forward.1} parent=1 // pred_check_branch
      %69 = sbr.rel (0) target = $region25
    $region24: #{fc_vec_forward.1} parent=1 // pred_region
      _
    $region25: #{fc_vec_forward.1} parent=1 // pred_fallthru
      _
    // Predicated region
    $region26: #{fc_vec_forward.1} parent=1 // pred_check
      _
    $region27: #{fc_vec_forward.1} parent=1 // pred_check_branch
      %71 = sbr.rel (0) target = $region29
    $region28: #{fc_vec_forward.1} parent=1 // pred_region
      _
    $region29: #{fc_vec_forward.1} parent=1 // pred_fallthru
      _
    // Predicated region
    $region30: #{fc_vec_forward.1} parent=1 // pred_check
      _
    $region31: #{fc_vec_forward.1} parent=1 // pred_check_branch
      %73 = sbr.rel (0) target = $region33
    $region32: #{fc_vec_forward.1} parent=1 // pred_region
      %74 = dma.done [#allocation4], 512
    $region33: #{fc_vec_forward.1} parent=1 // pred_fallthru
      _
    // Predicated region
    $region34: #{fc_vec_forward.1} parent=1 // pred_check
      _
    $region35: #{fc_vec_forward.1} parent=1 // pred_check_branch
      %76 = sbr.rel (0) target = $region37
    $region36: #{fc_vec_forward.1} parent=1 // pred_region
      %77 = dma.done [#allocation7], 512
    $region37: #{fc_vec_forward.1} parent=1 // pred_fallthru
      _
    // Predicated region
    $region38: #{fc_vec_forward.1} parent=1 // pred_check
      _
    $region39: #{fc_vec_forward.1} parent=1 // pred_check_branch
      %79 = sbr.rel (0) target = $region41
    $region40: #{fc_vec_forward.1} parent=1 // pred_region
      %80 = dma.done [#allocation7], 512
    $region41: #{fc_vec_forward.1} parent=1 // pred_fallthru
      _
    // Predicated region
    $region42: #{fc_vec_forward.1} parent=1 // pred_check
      _
    $region43: #{fc_vec_forward.1} parent=1 // pred_check_branch
      %82 = sbr.rel (0) target = $region45
    $region44: #{fc_vec_forward.1} parent=1 // pred_region
      %83 = dma.done [#allocation10], 512
    $region45: #{fc_vec_forward.1} parent=1 // pred_fallthru
      _
    %v84 = vld [vmem:[%s0] sm:$0x3]
    %v85 = vld [vmem:[#allocation3] sm:$0xff]
    %v86 = vld [vmem:[#allocation3 + $0x8] sm:$0xff]
    %v87 = vld [vmem:[#allocation3 + $0x10] sm:$0xff]
    %v88 = vld [vmem:[#allocation3 + $0x18] sm:$0xff]
    %v89 = vld [vmem:[#allocation6] sm:$0xff]
    %v90 = vld [vmem:[#allocation6 + $0x8] sm:$0xff]
    %v91 = vld [vmem:[#allocation6 + $0x10] sm:$0xff]
    %v92 = vld [vmem:[#allocation6 + $0x18] sm:$0xff]
    %94 = vset.pattern.permute.xlu0 0
    %95 = vperm.xlu0 %94, %v89
    %v96 = vpop.permute.xlu0 %95
    %99 = vset.pattern.permute.xlu0 0
    %100 = vperm.xlu0 %99, %v90
    %v101 = vpop.permute.xlu0 %100
    %104 = vset.pattern.permute.xlu0 0
    %105 = vperm.xlu0 %104, %v91
    %v106 = vpop.permute.xlu0 %105
    %109 = vset.pattern.permute.xlu0 0
    %110 = vperm.xlu0 %109, %v92
    %v111 = vpop.permute.xlu0 %110
    %vm113 = vcmask 15360
    %v115 = vsel %vm113, %v85, 0
    %v118 = vsel %vm113, %v86, 0
    %v121 = vsel %vm113, %v87, 0
    %v124 = vsel %vm113, %v88, 0
    %vm126 = vcmask 1041408
    %v128 = vsel %vm126, %v84, 0
    %130 = vmatprep.subr.mxu0 0.0
    %131 = vmatpush1.msra.mxu0 %v128
    %132 = vmatprep.subr.mxu0 0.0
    %133 = vmatpush1.msra.mxu0 0.0
    %134 = vmatprep.subr.mxu0 0.0
    %135 = vmatpush1.msra.mxu0 0.0
    %136 = vmatprep.subr.mxu0 0.0
    %137 = vmatpush1.msra.mxu0 0.0
    %138 = vmatprep.subr.mxu0 0.0
    %139 = vmatpush1.msra.mxu0 0.0
    %140 = vmatprep.subr.mxu0 0.0
    %141 = vmatpush1.msra.mxu0 0.0
    %142 = vmatprep.subr.mxu0 0.0
    %143 = vmatpush1.msra.mxu0 0.0
    %144 = vmatprep.subr.mxu0 0.0
    %145 = vmatpush1.msra.mxu0 0.0
    %146 = vmatprep.subr.mxu0 0.0
    %147 = vmatpush1.msra.mxu0 0.0
    %148 = vmatprep.subr.mxu0 0.0
    %149 = vmatpush1.msra.mxu0 0.0
    %150 = vmatprep.subr.mxu0 0.0
    %151 = vmatpush1.msra.mxu0 0.0
    %152 = vmatprep.subr.mxu0 0.0
    %153 = vmatpush1.msra.mxu0 0.0
    %154 = vmatprep.subr.mxu0 0.0
    %155 = vmatpush1.msra.mxu0 0.0
    %156 = vmatprep.subr.mxu0 0.0
    %157 = vmatpush1.msra.mxu0 0.0
    %158 = vmatprep.subr.mxu0 0.0
    %159 = vmatpush1.msra.mxu0 0.0
    %160 = vmatprep.subr.mxu0 0.0
    %161 = vmatpush1.msra.mxu0 0.0
    %162 = vmatprep.subr.mxu0 0.0
    %163 = vmatpush1.msra.mxu0 0.0
    %164 = vmatprep.subr.mxu0 0.0
    %165 = vmatpush1.msra.mxu0 0.0
    %166 = vmatprep.subr.mxu0 0.0
    %167 = vmatpush1.msra.mxu0 0.0
    %168 = vmatprep.subr.mxu0 0.0
    %169 = vmatpush1.msra.mxu0 0.0
    %170 = vmatprep.subr.mxu0 0.0
    %171 = vmatpush1.msra.mxu0 0.0
    %172 = vmatprep.subr.mxu0 0.0
    %173 = vmatpush1.msra.mxu0 0.0
    %174 = vmatprep.subr.mxu0 0.0
    %175 = vmatpush1.msra.mxu0 0.0
    %176 = vmatprep.subr.mxu0 0.0
    %177 = vmatpush1.msra.mxu0 0.0
    %178 = vmatprep.subr.mxu0 0.0
    %179 = vmatpush1.msra.mxu0 0.0
    %180 = vmatprep.subr.mxu0 0.0
    %181 = vmatpush1.msra.mxu0 0.0
    %182 = vmatprep.subr.mxu0 0.0
    %183 = vmatpush1.msra.mxu0 0.0
    %184 = vmatprep.subr.mxu0 0.0
    %185 = vmatpush1.msra.mxu0 0.0
    %186 = vmatprep.subr.mxu0 0.0
    %187 = vmatpush1.msra.mxu0 0.0
    %188 = vmatprep.subr.mxu0 0.0
    %189 = vmatpush1.msra.mxu0 0.0
    %190 = vmatprep.subr.mxu0 0.0
    %191 = vmatpush1.msra.mxu0 0.0
    %192 = vmatprep.subr.mxu0 0.0
    %193 = vmatpush1.msra.mxu0 0.0
    %194 = vmatprep.mubr.f32.mxu0 0.0
    %195 = vmatmul.mubr.f32.gmra.mrb[0].mxu0 %v115
    %v196 = vpop.f32.mrb[0].mxu0
    %v197 = vadd.f32 %v96, %v196
    %v198 = vpop.f32.mrb[0].mxu0
    %199 = vmatprep.mubr.f32.mxu0 0.0
    %200 = vmatmul.mubr.f32.gmra.mrb[0].mxu0 %v118
    %v201 = vpop.f32.mrb[0].mxu0
    %v202 = vadd.f32 %v101, %v201
    %v203 = vpop.f32.mrb[0].mxu0
    %204 = vmatprep.mubr.f32.mxu0 0.0
    %205 = vmatmul.mubr.f32.gmra.mrb[0].mxu0 %v121
    %v206 = vpop.f32.mrb[0].mxu0
    %v207 = vadd.f32 %v106, %v206
    %v208 = vpop.f32.mrb[0].mxu0
    %209 = vmatprep.mubr.f32.mxu0 0.0
    %210 = vmatmul.mubr.f32.gmra.mrb[0].mxu0 %v124
    %v211 = vpop.f32.mrb[0].mxu0
    %v212 = vadd.f32 %v111, %v211
    %v213 = vpop.f32.mrb[0].mxu0
    %214 = vdwg.mxu0
    %v215 = vmax.f32 %v197, 0.0
    %v216 = vmax.f32 %v202, 0.0
    %v217 = vmax.f32 %v207, 0.0
    %v218 = vmax.f32 %v212, 0.0
    %v219 = vld [vmem:[#allocation8] sm:$0xff]
    %v220 = vld [vmem:[#allocation8 + $0x8] sm:$0xff]
    %v221 = vld [vmem:[#allocation8 + $0x10] sm:$0xff]
    %v222 = vld [vmem:[#allocation8 + $0x18] sm:$0xff]
    %v223 = vld [vmem:[#allocation9] sm:$0xff]
    %v224 = vld [vmem:[#allocation9 + $0x8] sm:$0xff]
    %v225 = vld [vmem:[#allocation9 + $0x10] sm:$0xff]
    %v226 = vld [vmem:[#allocation9 + $0x18] sm:$0xff]
    %228 = vset.pattern.permute.xlu0 0
    %229 = vperm.xlu0 %228, %v223
    %v230 = vpop.permute.xlu0 %229
    %233 = vset.pattern.permute.xlu0 0
    %234 = vperm.xlu0 %233, %v224
    %v235 = vpop.permute.xlu0 %234
    %238 = vset.pattern.permute.xlu0 0
    %239 = vperm.xlu0 %238, %v225
    %v240 = vpop.permute.xlu0 %239
    %243 = vset.pattern.permute.xlu0 0
    %244 = vperm.xlu0 %243, %v226
    %v245 = vpop.permute.xlu0 %244
    %vm247 = vcmask 261120
    %v249 = vsel %vm247, %v219, 0
    %v252 = vsel %vm247, %v220, 0
    %v255 = vsel %vm247, %v221, 0
    %v258 = vsel %vm247, %v222, 0
    %260 = vmatprep.subr.mxu0 0.0
    %261 = vmatpush1.msra.mxu0 %v215
    %262 = vmatprep.subr.mxu0 0.0
    %263 = vmatpush1.msra.mxu0 %v216
    %264 = vmatprep.subr.mxu0 0.0
    %265 = vmatpush1.msra.mxu0 %v217
    %266 = vmatprep.subr.mxu0 0.0
    %267 = vmatpush1.msra.mxu0 %v218
    %268 = vmatprep.subr.mxu0 0.0
    %269 = vmatpush1.msra.mxu0 0.0
    %270 = vmatprep.subr.mxu0 0.0
    %271 = vmatpush1.msra.mxu0 0.0
    %272 = vmatprep.subr.mxu0 0.0
    %273 = vmatpush1.msra.mxu0 0.0
    %274 = vmatprep.subr.mxu0 0.0
    %275 = vmatpush1.msra.mxu0 0.0
    %276 = vmatprep.subr.mxu0 0.0
    %277 = vmatpush1.msra.mxu0 0.0
    %278 = vmatprep.subr.mxu0 0.0
    %279 = vmatpush1.msra.mxu0 0.0
    %280 = vmatprep.subr.mxu0 0.0
    %281 = vmatpush1.msra.mxu0 0.0
    %282 = vmatprep.subr.mxu0 0.0
    %283 = vmatpush1.msra.mxu0 0.0
    %284 = vmatprep.subr.mxu0 0.0
    %285 = vmatpush1.msra.mxu0 0.0
    %286 = vmatprep.subr.mxu0 0.0
    %287 = vmatpush1.msra.mxu0 0.0
    %288 = vmatprep.subr.mxu0 0.0
    %289 = vmatpush1.msra.mxu0 0.0
    %290 = vmatprep.subr.mxu0 0.0
    %291 = vmatpush1.msra.mxu0 0.0
    %292 = vmatprep.subr.mxu0 0.0
    %293 = vmatpush1.msra.mxu0 0.0
    %294 = vmatprep.subr.mxu0 0.0
    %295 = vmatpush1.msra.mxu0 0.0
    %296 = vmatprep.subr.mxu0 0.0
    %297 = vmatpush1.msra.mxu0 0.0
    %298 = vmatprep.subr.mxu0 0.0
    %299 = vmatpush1.msra.mxu0 0.0
    %300 = vmatprep.subr.mxu0 0.0
    %301 = vmatpush1.msra.mxu0 0.0
    %302 = vmatprep.subr.mxu0 0.0
    %303 = vmatpush1.msra.mxu0 0.0
    %304 = vmatprep.subr.mxu0 0.0
    %305 = vmatpush1.msra.mxu0 0.0
    %306 = vmatprep.subr.mxu0 0.0
    %307 = vmatpush1.msra.mxu0 0.0
    %308 = vmatprep.subr.mxu0 0.0
    %309 = vmatpush1.msra.mxu0 0.0
    %310 = vmatprep.subr.mxu0 0.0
    %311 = vmatpush1.msra.mxu0 0.0
    %312 = vmatprep.subr.mxu0 0.0
    %313 = vmatpush1.msra.mxu0 0.0
    %314 = vmatprep.subr.mxu0 0.0
    %315 = vmatpush1.msra.mxu0 0.0
    %316 = vmatprep.subr.mxu0 0.0
    %317 = vmatpush1.msra.mxu0 0.0
    %318 = vmatprep.subr.mxu0 0.0
    %319 = vmatpush1.msra.mxu0 0.0
    %320 = vmatprep.subr.mxu0 0.0
    %321 = vmatpush1.msra.mxu0 0.0
    %322 = vmatprep.subr.mxu0 0.0
    %323 = vmatpush1.msra.mxu0 0.0
    %324 = vmatprep.mubr.f32.mxu0 0.0
    %325 = vmatmul.mubr.f32.gmra.mrb[0].mxu0 %v249
    %v326 = vpop.f32.mrb[0].mxu0
    %v327 = vadd.f32 %v230, %v326
    %v328 = vpop.f32.mrb[0].mxu0
    %329 = vmatprep.mubr.f32.mxu0 0.0
    %330 = vmatmul.mubr.f32.gmra.mrb[0].mxu0 %v252
    %v331 = vpop.f32.mrb[0].mxu0
    %v332 = vadd.f32 %v235, %v331
    %v333 = vpop.f32.mrb[0].mxu0
    %334 = vmatprep.mubr.f32.mxu0 0.0
    %335 = vmatmul.mubr.f32.gmra.mrb[0].mxu0 %v255
    %v336 = vpop.f32.mrb[0].mxu0
    %v337 = vadd.f32 %v240, %v336
    %v338 = vpop.f32.mrb[0].mxu0
    %339 = vmatprep.mubr.f32.mxu0 0.0
    %340 = vmatmul.mubr.f32.gmra.mrb[0].mxu0 %v258
    %v341 = vpop.f32.mrb[0].mxu0
    %v342 = vadd.f32 %v245, %v341
    %v343 = vpop.f32.mrb[0].mxu0
    %344 = vdwg.mxu0
    %v345 = vmax.f32 %v327, 0.0
    %v346 = vmax.f32 %v332, 0.0
    %v347 = vmax.f32 %v337, 0.0
    %v348 = vmax.f32 %v342, 0.0
    %v349 = vld [vmem:[%s5] sm:$0x1]
    %v350 = vld [vmem:[#allocation2] sm:$0x1]
    %352 = vset.pattern.permute.xlu0 0
    %353 = vperm.xlu0 %352, %v350
    %v354 = vpop.permute.xlu0 %353
    %v356 = vlaneseq
    %v357 = vshrl.u32 %v356, 7
    %v358 = vsub.s32 0, %v357
    %v359 = vrot.slane %v354, %v358
    %v361 = vsel %vm247, %v349, 0
    %363 = vmatprep.subr.mxu0 0.0
    %364 = vmatpush1.msra.mxu0 %v345
    %365 = vmatprep.subr.mxu0 0.0
    %366 = vmatpush1.msra.mxu0 %v346
    %367 = vmatprep.subr.mxu0 0.0
    %368 = vmatpush1.msra.mxu0 %v347
    %369 = vmatprep.subr.mxu0 0.0
    %370 = vmatpush1.msra.mxu0 %v348
    %371 = vmatprep.subr.mxu0 0.0
    %372 = vmatpush1.msra.mxu0 0.0
    %373 = vmatprep.subr.mxu0 0.0
    %374 = vmatpush1.msra.mxu0 0.0
    %375 = vmatprep.subr.mxu0 0.0
    %376 = vmatpush1.msra.mxu0 0.0
    %377 = vmatprep.subr.mxu0 0.0
    %378 = vmatpush1.msra.mxu0 0.0
    %379 = vmatprep.subr.mxu0 0.0
    %380 = vmatpush1.msra.mxu0 0.0
    %381 = vmatprep.subr.mxu0 0.0
    %382 = vmatpush1.msra.mxu0 0.0
    %383 = vmatprep.subr.mxu0 0.0
    %384 = vmatpush1.msra.mxu0 0.0
    %385 = vmatprep.subr.mxu0 0.0
    %386 = vmatpush1.msra.mxu0 0.0
    %387 = vmatprep.subr.mxu0 0.0
    %388 = vmatpush1.msra.mxu0 0.0
    %389 = vmatprep.subr.mxu0 0.0
    %390 = vmatpush1.msra.mxu0 0.0
    %391 = vmatprep.subr.mxu0 0.0
    %392 = vmatpush1.msra.mxu0 0.0
    %393 = vmatprep.subr.mxu0 0.0
    %394 = vmatpush1.msra.mxu0 0.0
    %395 = vmatprep.subr.mxu0 0.0
    %396 = vmatpush1.msra.mxu0 0.0
    %397 = vmatprep.subr.mxu0 0.0
    %398 = vmatpush1.msra.mxu0 0.0
    %399 = vmatprep.subr.mxu0 0.0
    %400 = vmatpush1.msra.mxu0 0.0
    %401 = vmatprep.subr.mxu0 0.0
    %402 = vmatpush1.msra.mxu0 0.0
    %403 = vmatprep.subr.mxu0 0.0
    %404 = vmatpush1.msra.mxu0 0.0
    %405 = vmatprep.subr.mxu0 0.0
    %406 = vmatpush1.msra.mxu0 0.0
    %407 = vmatprep.subr.mxu0 0.0
    %408 = vmatpush1.msra.mxu0 0.0
    %409 = vmatprep.subr.mxu0 0.0
    %410 = vmatpush1.msra.mxu0 0.0
    %411 = vmatprep.subr.mxu0 0.0
    %412 = vmatpush1.msra.mxu0 0.0
    %413 = vmatprep.subr.mxu0 0.0
    %414 = vmatpush1.msra.mxu0 0.0
    %415 = vmatprep.subr.mxu0 0.0
    %416 = vmatpush1.msra.mxu0 0.0
    %417 = vmatprep.subr.mxu0 0.0
    %418 = vmatpush1.msra.mxu0 0.0
    %419 = vmatprep.subr.mxu0 0.0
    %420 = vmatpush1.msra.mxu0 0.0
    %421 = vmatprep.subr.mxu0 0.0
    %422 = vmatpush1.msra.mxu0 0.0
    %423 = vmatprep.subr.mxu0 0.0
    %424 = vmatpush1.msra.mxu0 0.0
    %425 = vmatprep.subr.mxu0 0.0
    %426 = vmatpush1.msra.mxu0 0.0
    %427 = vmatprep.mubr.f32.mxu0 0.0
    %428 = vmatmul.mubr.f32.gmra.mrb[0].mxu0 %v361
    %v429 = vpop.f32.mrb[0].mxu0
    %v430 = vadd.f32 %v359, %v429
    %v431 = vpop.f32.mrb[0].mxu0
    %432 = vdwg.mxu0
    %vm433 = vcmask 57344
    %434 = vst.msk [vmem:[#allocation11] sm:$0x1] %vm433, %v430
    // Predicated region
    $region46: #{fc_vec_forward.1} parent=1 // pred_check
      _
    $region47: #{fc_vec_forward.1} parent=1 // pred_check_branch
      %436 = sbr.rel (0) target = $region49
    $region48: #{fc_vec_forward.1} parent=1 // pred_region
      %s438 = ssub.s32 16, 16
      %439 = vsyncadd [#allocation5], %s438
      %s441 = sshll.u32 [#allocation11], 4
      %s442 = int_to_ptr.vmem [resolvable:$true] %s441
      %444 = dma.vmem_to_hbm [thread:$0]  %s442, 16, %s7, [#allocation5]
    $region49: #{fc_vec_forward.1} parent=1 // pred_fallthru
      _
    // Predicated region
    $region50: #{fc_vec_forward.1} parent=1 // pred_check
      _
    $region51: #{fc_vec_forward.1} parent=1 // pred_check_branch
      %446 = sbr.rel (0) target = $region53
    $region52: #{fc_vec_forward.1} parent=1 // pred_region
      %447 = dma.done [#allocation5], 16
    $region53: #{fc_vec_forward.1} parent=1 // pred_fallthru
      _
    %448 = vsyncpa [#allocation4], 1
    %449 = vsyncpa [#allocation7], 1
    %450 = vsyncpa [#allocation10], 1
    %451 = vsyncpa [#allocation5], 1

</llo_original>
